<compile_context>
chip_gen: v7x
topology: tpu7x:2x2x1
jax: 0.10.0
libtpu: 0.0.40
codegen_flags: <defaults>
</compile_context>

<pallas_src>
import functools
import math

import jax
import jax.numpy as jnp
from jax.experimental import pallas as pl
from jax.experimental.pallas import tpu as pltpu

HIDDEN = 300          # logical hidden width (matches the PyTorch module)
H_PAD = 384           # lane-aligned hidden width (3 * 128)
EPS = 1e-5            # nn.LayerNorm default eps

# rows of the fused (8, H_PAD) parameter array
_ROW_B1, _ROW_G1, _ROW_BE1, _ROW_B2, _ROW_G2, _ROW_BE2, _ROW_W3, _ROW_B3 = range(8)


# --------------------------------------------------------------------------- kernel

def _make_qnet_kernel(bf16_epilogue):
    inv_n = 1.0 / float(HIDDEN)
    ep_dt = jnp.bfloat16 if bf16_epilogue else jnp.float32

    def layer_norm_relu(h, gamma, beta):
        # One-pass LayerNorm over the 300 real lanes (f32). The padded lanes of h are
        # exact zeros (zero-padded weight columns / biases), so they drop out of both
        # sums; divide by 300, not 384.
        s = jnp.sum(h, axis=-1, keepdims=True)
        ss = jnp.sum(h * h, axis=-1, keepdims=True)
        mu = s * inv_n
        var = jnp.maximum(ss * inv_n - mu * mu, 0.0)
        hn = (h - mu) * jax.lax.rsqrt(var + EPS)
        # Post-norm affine + ReLU + cast, fused, in ep_dt (bf16 on v6e/v7x to relieve
        # the VALU slot; f32 on v5e which has no bf16 VPU). gamma/beta are zero in the
        # padded lanes, so padded lanes come back out as exact zeros. Output is bf16
        # because it directly feeds the next MXU matmul.
        hn = hn.astype(ep_dt)
        out = jnp.maximum(hn * gamma.astype(ep_dt) + beta.astype(ep_dt), 0.0)
        return out.astype(jnp.bfloat16)

    def kernel(x_ref, w1_ref, w2_ref, vecs_ref, o_ref):
        # x_ref:   (tb, d_in) f32    batch tile of the concatenated input
        # w1_ref:  (d_in, H_PAD) bf16 resident
        # w2_ref:  (H_PAD, H_PAD) bf16 resident
        # vecs_ref:(8, H_PAD) f32    fused small vectors
        # o_ref:   (1, tb) f32       lane-dense output tile (batch on the lane axis)
        vecs = vecs_ref[...]
        b1 = vecs[_ROW_B1:_ROW_B1 + 1]
        g1 = vecs[_ROW_G1:_ROW_G1 + 1]
        be1 = vecs[_ROW_BE1:_ROW_BE1 + 1]
        b2 = vecs[_ROW_B2:_ROW_B2 + 1]
        g2 = vecs[_ROW_G2:_ROW_G2 + 1]
        be2 = vecs[_ROW_BE2:_ROW_BE2 + 1]
        w3_row = vecs[_ROW_W3:_ROW_W3 + 1]               # (1, H_PAD)
        b3 = vecs[_ROW_B3:_ROW_B3 + 1, 0:1]              # (1, 1)

        # ---- Linear(d_in, 300): single MXU pass over the concatenated input
        h = jnp.dot(x_ref[...].astype(jnp.bfloat16), w1_ref[...],
                    preferred_element_type=jnp.float32) + b1
        h = layer_norm_relu(h, g1, be1)                  # (tb, H_PAD) bf16

        # ---- Linear(300, 300) + LayerNorm + ReLU
        h2 = jnp.dot(h, w2_ref[...], preferred_element_type=jnp.float32) + b2
        h2 = layer_norm_relu(h2, g2, be2)                # (tb, H_PAD) bf16

        # ---- Linear(300, 1): q = w3 . h2^T -> lane-dense (1, tb) result.
        # bf16 operands, f32 accumulation (avoids multi-pass f32 MXU work).
        q = jax.lax.dot_general(
            w3_row.astype(jnp.bfloat16), h2,
            dimension_numbers=(((1,), (1,)), ((), ())),
            preferred_element_type=jnp.float32)          # (1, tb)
        o_ref[...] = (q + b3).astype(o_ref.dtype)

    return kernel


# --------------------------------------------------------------------------- params

def init_qnet_params(key, d_in):
    """Unpadded f32 parameters with PyTorch-default init:
       Linear: U(-1/sqrt(fan_in), 1/sqrt(fan_in)); LayerNorm: gamma=1, beta=0."""
    ks = jax.random.split(key, 6)

    def lin(kw, kb, fan_in, fan_out):
        bound = 1.0 / math.sqrt(fan_in)
        w = jax.random.uniform(kw, (fan_in, fan_out), jnp.float32, -bound, bound)
        b = jax.random.uniform(kb, (fan_out,), jnp.float32, -bound, bound)
        return w, b

    w1, b1 = lin(ks[0], ks[1], d_in, HIDDEN)
    w2, b2 = lin(ks[2], ks[3], HIDDEN, HIDDEN)
    w3, b3 = lin(ks[4], ks[5], HIDDEN, 1)
    g1 = jnp.ones((HIDDEN,), jnp.float32)
    be1 = jnp.zeros((HIDDEN,), jnp.float32)
    g2 = jnp.ones((HIDDEN,), jnp.float32)
    be2 = jnp.zeros((HIDDEN,), jnp.float32)
    return (w1, b1, g1, be1, w2, b2, g2, be2, w3, b3)


def pack_qnet_params(params, compute_dtype=jnp.bfloat16):
    """Pad hidden width 300 -> 384 (zeros) and fuse the small vectors into (8, 384)."""
    (w1, b1, g1, be1, w2, b2, g2, be2, w3, b3) = params
    pad = H_PAD - HIDDEN

    w1p = jnp.pad(w1, ((0, 0), (0, pad))).astype(compute_dtype)     # (d_in, H_PAD)
    w2p = jnp.pad(w2, ((0, pad), (0, pad))).astype(compute_dtype)   # (H_PAD, H_PAD)

    def row(v):
        return jnp.pad(jnp.reshape(v, (1, HIDDEN)), ((0, 0), (0, pad)))

    vecs = jnp.concatenate(
        [row(b1), row(g1), row(be1), row(b2), row(g2), row(be2),
         row(w3), jnp.full((1, H_PAD), b3[0], jnp.float32)],
        axis=0).astype(jnp.float32)                                  # (8, H_PAD)
    return (w1p, w2p, vecs)


# --------------------------------------------------------------------------- wrapper

@functools.lru_cache(maxsize=1)
def _bf16_epilogue_ok():
    # bf16 VPU exists on v6e / v7x; v5e (and older) keep f32 elementwise.
    try:
        kind = jax.devices()[0].device_kind.lower()
    except Exception:
        return False
    return ("v6" in kind) or ("v7" in kind)


def _choose_batch_tile(B):
    # Whole batch in one block for small/medium B: block dims == array dims is always
    # layout-legal, and one grid step minimizes the ~0.35us per-step fixed cost.
    if B <= 256:
        return B
    # Large B: 128-aligned tiles up to 1024 rows; cdiv(B,2) keeps >= 2 grid steps so
    # the "parallel" batch axis can be sharded across both TensorCores on v7x.
    tb = ((pl.cdiv(B, 2) + 127) // 128) * 128
    return min(tb, 1024)


def qnet_forward(state_vec, my_act_vec, other_act_vec, packed_params, *, tb=None):
    segs = [state_vec, my_act_vec]
    if other_act_vec is not None:
        segs.append(other_act_vec)
    # torch.cat equivalent done in the wrapper: one (B, d_in) input -> one MXU pass.
    x = jnp.concatenate([jnp.asarray(s, jnp.float32) for s in segs], axis=1)
    B, d_in = x.shape

    w1p, w2p, vecs = packed_params
    assert w1p.shape == (d_in, H_PAD), (w1p.shape, d_in)

    if tb is None:
        tb = _choose_batch_tile(B)
    tb = min(tb, B)
    grid = (pl.cdiv(B, tb),)

    full = lambda i: (0, 0)
    in_specs = [
        pl.BlockSpec((tb, d_in), lambda i: (i, 0)),      # batch-tiled input
        pl.BlockSpec((d_in, H_PAD), full),               # resident W1 (bf16)
        pl.BlockSpec((H_PAD, H_PAD), full),              # resident W2 (bf16)
        pl.BlockSpec((8, H_PAD), full),                  # fused small vectors (f32)
    ]

    out = pl.pallas_call(
        _make_qnet_kernel(_bf16_epilogue_ok()),
        out_shape=jax.ShapeDtypeStruct((1, B), jnp.float32),
        grid_spec=pltpu.PrefetchScalarGridSpec(
            num_scalar_prefetch=0,
            grid=grid,
            in_specs=in_specs,
            out_specs=pl.BlockSpec((1, tb), lambda i: (0, i)),
        ),
        compiler_params=pltpu.CompilerParams(
            dimension_semantics=("parallel",),
        ),
    )(x, w1p, w2p, vecs)

    # (1, B) -> (B, 1): same element order, trivial reshape in the wrapper.
    return jnp.reshape(out, (B, 1))


# --------------------------------------------------------------------------- reference

def qnet_reference(state_vec, my_act_vec, other_act_vec, params,
                   compute_dtype=jnp.bfloat16):
    """Pure-JAX reference mirroring the kernel's bf16 matmul-operand casts (all three
       Linear layers). Use compute_dtype=jnp.float32 for the exact all-f32 PyTorch
       forward."""
    if other_act_vec is not None:
        x = jnp.concatenate((state_vec, my_act_vec, other_act_vec), axis=1)
    else:
        x = jnp.concatenate((state_vec, my_act_vec), axis=1)
    (w1, b1, g1, be1, w2, b2, g2, be2, w3, b3) = params

    def ln(h, g, be):
        mu = jnp.mean(h, axis=-1, keepdims=True)
        var = jnp.mean((h - mu) ** 2, axis=-1, keepdims=True)
        return (h - mu) * jax.lax.rsqrt(var + EPS) * g + be

    dt = compute_dtype
    h = jnp.dot(x.astype(dt), w1.astype(dt), preferred_element_type=jnp.float32) + b1
    h = jnp.maximum(ln(h, g1, be1), 0.0)
    h = jnp.dot(h.astype(dt), w2.astype(dt), preferred_element_type=jnp.float32) + b2
    h = jnp.maximum(ln(h, g2, be2), 0.0)
    return jnp.dot(h.astype(dt), w3.astype(dt),
                   preferred_element_type=jnp.float32) + b3


# --------------------------------------------------------------------------- main

if __name__ == "__main__":
    # TODO(synk): x.requires_grad_() is autograd bookkeeping only; no forward-pass
    # equivalent is needed in this inference kernel.
    key = jax.random.PRNGKey(0)
    k_param, k_state, k_my, k_other, k_big = jax.random.split(key, 5)

    B = 8
    n_obs = 24
    my_act_dim = 4
    other_act_dim = 4
    d_in = n_obs + my_act_dim + other_act_dim

    params = init_qnet_params(k_param, d_in)
    packed = pack_qnet_params(params)

    state_vec = jax.random.normal(k_state, (B, n_obs), jnp.float32)
    my_act_vec = jax.random.normal(k_my, (B, my_act_dim), jnp.float32)
    other_act_vec = jax.random.normal(k_other, (B, other_act_dim), jnp.float32)

    # 3-input path (state, my_act, other_act), single whole-batch block
    out = jax.block_until_ready(qnet_forward(state_vec, my_act_vec, other_act_vec, packed))
    ref = qnet_reference(state_vec, my_act_vec, other_act_vec, params)
    assert out.shape == (B, 1), out.shape
    assert jnp.allclose(out, ref, atol=1e-2, rtol=1e-2), (out, ref)

    # 2-input path (other_act_vec=None)
    params2 = init_qnet_params(k_param, n_obs + my_act_dim)
    packed2 = pack_qnet_params(params2)
    out2 = jax.block_until_ready(qnet_forward(state_vec, my_act_vec, None, packed2))
    ref2 = qnet_reference(state_vec, my_act_vec, None, params2)
    assert out2.shape == (B, 1), out2.shape
    assert jnp.allclose(out2, ref2, atol=1e-2, rtol=1e-2), (out2, ref2)

    # medium batch: still one whole-batch block (B <= 256)
    B2 = 160
    kb1, kb2, kb3 = jax.random.split(k_big, 3)
    sv = jax.random.normal(kb1, (B2, n_obs), jnp.float32)
    mv = jax.random.normal(kb2, (B2, my_act_dim), jnp.float32)
    ov = jax.random.normal(kb3, (B2, other_act_dim), jnp.float32)
    out3 = jax.block_until_ready(qnet_forward(sv, mv, ov, packed))
    ref3 = qnet_reference(sv, mv, ov, params)
    assert out3.shape == (B2, 1), out3.shape
    assert jnp.allclose(out3, ref3, atol=1e-2, rtol=1e-2)

    # large batch: multi-step grid (tb=256, 2 steps, padded last block)
    B3 = 384
    kc1, kc2, kc3 = jax.random.split(jax.random.PRNGKey(1), 3)
    sv3 = jax.random.normal(kc1, (B3, n_obs), jnp.float32)
    mv3 = jax.random.normal(kc2, (B3, my_act_dim), jnp.float32)
    ov3 = jax.random.normal(kc3, (B3, other_act_dim), jnp.float32)
    out4 = jax.block_until_ready(qnet_forward(sv3, mv3, ov3, packed))
    ref4 = qnet_reference(sv3, mv3, ov3, params)
    assert out4.shape == (B3, 1), out4.shape
    assert jnp.allclose(out4, ref4, atol=1e-2, rtol=1e-2)

    print("KERNEL_OK")
</pallas_src>

<mosaic_0001>
module attributes {stable_mosaic.version = 11 : i64} {
  func.func @kernel(%arg0: i32, %arg1: memref<8x32xf32, #tpu.memory_space<vmem>>, %arg2: memref<32x384xbf16, #tpu.memory_space<vmem>>, %arg3: memref<384x384xbf16, #tpu.memory_space<vmem>>, %arg4: memref<8x384xf32, #tpu.memory_space<vmem>>, %arg5: memref<1x8xf32, #tpu.memory_space<vmem>>) attributes {dimension_semantics = [#tpu.dimension_semantics<parallel>], iteration_bounds = array<i64: 1>, scalar_prefetch = 0 : i64, scratch_operands = 0 : i64, tpu.core_type = #tpu.core_type<tc>, window_params = [{transform_indices = @transform_0, window_bounds = array<i64: 8, 32>}, {pipeline_mode = #tpu.pipeline_mode<synchronous>, transform_indices = @transform_1, window_bounds = array<i64: 32, 384>}, {pipeline_mode = #tpu.pipeline_mode<synchronous>, transform_indices = @transform_2, window_bounds = array<i64: 384, 384>}, {pipeline_mode = #tpu.pipeline_mode<synchronous>, transform_indices = @transform_3, window_bounds = array<i64: 8, 384>}, {transform_indices = @transform_4, window_bounds = array<i64: 1, 8>}]} {
    %c0 = arith.constant 0 : index
    %c0_0 = arith.constant 0 : index
    %0 = vector.load %arg4[%c0, %c0_0] : memref<8x384xf32, #tpu.memory_space<vmem>>, vector<8x384xf32>
    %1 = vector.extract_strided_slice %0 {offsets = [0, 0], sizes = [1, 384], strides = [1, 1]} : vector<8x384xf32> to vector<1x384xf32>
    %2 = vector.extract_strided_slice %0 {offsets = [1, 0], sizes = [1, 384], strides = [1, 1]} : vector<8x384xf32> to vector<1x384xf32>
    %3 = vector.extract_strided_slice %0 {offsets = [2, 0], sizes = [1, 384], strides = [1, 1]} : vector<8x384xf32> to vector<1x384xf32>
    %4 = vector.extract_strided_slice %0 {offsets = [3, 0], sizes = [1, 384], strides = [1, 1]} : vector<8x384xf32> to vector<1x384xf32>
    %5 = vector.extract_strided_slice %0 {offsets = [4, 0], sizes = [1, 384], strides = [1, 1]} : vector<8x384xf32> to vector<1x384xf32>
    %6 = vector.extract_strided_slice %0 {offsets = [5, 0], sizes = [1, 384], strides = [1, 1]} : vector<8x384xf32> to vector<1x384xf32>
    %7 = vector.extract_strided_slice %0 {offsets = [6, 0], sizes = [1, 384], strides = [1, 1]} : vector<8x384xf32> to vector<1x384xf32>
    %8 = vector.extract_strided_slice %0 {offsets = [7, 0], sizes = [1, 1], strides = [1, 1]} : vector<8x384xf32> to vector<1x1xf32>
    %c0_1 = arith.constant 0 : index
    %c0_2 = arith.constant 0 : index
    %9 = vector.load %arg1[%c0_1, %c0_2] : memref<8x32xf32, #tpu.memory_space<vmem>>, vector<8x32xf32>
    %10 = arith.truncf %9 : vector<8x32xf32> to vector<8x32xbf16>
    %c0_3 = arith.constant 0 : index
    %c0_4 = arith.constant 0 : index
    %11 = vector.load %arg2[%c0_3, %c0_4] : memref<32x384xbf16, #tpu.memory_space<vmem>>, vector<32x384xbf16>
    %cst = arith.constant dense<0.000000e+00> : vector<8x384xf32>
    %12 = tpu.matmul %10, %11, %cst {dimension_numbers = #tpu.dot_dimension_numbers<[1], [0], [0], [1], [0, 0, 1, 1], [], []>} : vector<8x32xbf16>, vector<32x384xbf16>, vector<8x384xf32> -> vector<8x384xf32>
    %13 = vector.broadcast %1 : vector<1x384xf32> to vector<8x384xf32>
    %14 = arith.addf %12, %13 : vector<8x384xf32>
    %cst_5 = arith.constant dense<0.000000e+00> : vector<8xf32>
    %15 = vector.multi_reduction <add>, %14, %cst_5 [1] : vector<8x384xf32> to vector<8xf32>
    %16 = vector.shape_cast %15 : vector<8xf32> to vector<8x1xf32>
    %17 = arith.mulf %14, %14 : vector<8x384xf32>
    %cst_6 = arith.constant dense<0.000000e+00> : vector<8xf32>
    %18 = vector.multi_reduction <add>, %17, %cst_6 [1] : vector<8x384xf32> to vector<8xf32>
    %19 = vector.shape_cast %18 : vector<8xf32> to vector<8x1xf32>
    %cst_7 = arith.constant 0.00333333341 : f32
    %20 = vector.broadcast %cst_7 : f32 to vector<8x1xf32>
    %21 = arith.mulf %16, %20 : vector<8x1xf32>
    %cst_8 = arith.constant 0.00333333341 : f32
    %22 = vector.broadcast %cst_8 : f32 to vector<8x1xf32>
    %23 = arith.mulf %19, %22 : vector<8x1xf32>
    %24 = arith.mulf %21, %21 : vector<8x1xf32>
    %25 = arith.subf %23, %24 : vector<8x1xf32>
    %cst_9 = arith.constant 0.000000e+00 : f32
    %26 = vector.broadcast %cst_9 : f32 to vector<8x1xf32>
    %27 = arith.maximumf %25, %26 : vector<8x1xf32>
    %28 = vector.broadcast %21 : vector<8x1xf32> to vector<8x384xf32>
    %29 = arith.subf %14, %28 : vector<8x384xf32>
    %cst_10 = arith.constant 9.99999974E-6 : f32
    %30 = vector.broadcast %cst_10 : f32 to vector<8x1xf32>
    %31 = arith.addf %27, %30 : vector<8x1xf32>
    %32 = math.rsqrt %31 : vector<8x1xf32>
    %33 = vector.broadcast %32 : vector<8x1xf32> to vector<8x384xf32>
    %34 = arith.mulf %29, %33 : vector<8x384xf32>
    %35 = vector.broadcast %2 : vector<1x384xf32> to vector<8x384xf32>
    %36 = arith.mulf %34, %35 : vector<8x384xf32>
    %37 = vector.broadcast %3 : vector<1x384xf32> to vector<8x384xf32>
    %38 = arith.addf %36, %37 : vector<8x384xf32>
    %cst_11 = arith.constant 0.000000e+00 : f32
    %39 = vector.broadcast %cst_11 : f32 to vector<8x384xf32>
    %40 = arith.maximumf %38, %39 : vector<8x384xf32>
    %41 = arith.truncf %40 : vector<8x384xf32> to vector<8x384xbf16>
    %c0_12 = arith.constant 0 : index
    %c0_13 = arith.constant 0 : index
    %42 = vector.load %arg3[%c0_12, %c0_13] : memref<384x384xbf16, #tpu.memory_space<vmem>>, vector<384x384xbf16>
    %cst_14 = arith.constant dense<0.000000e+00> : vector<8x384xf32>
    %43 = tpu.matmul %41, %42, %cst_14 {dimension_numbers = #tpu.dot_dimension_numbers<[1], [0], [0], [1], [0, 0, 1, 1], [], []>} : vector<8x384xbf16>, vector<384x384xbf16>, vector<8x384xf32> -> vector<8x384xf32>
    %44 = vector.broadcast %4 : vector<1x384xf32> to vector<8x384xf32>
    %45 = arith.addf %43, %44 : vector<8x384xf32>
    %cst_15 = arith.constant dense<0.000000e+00> : vector<8xf32>
    %46 = vector.multi_reduction <add>, %45, %cst_15 [1] : vector<8x384xf32> to vector<8xf32>
    %47 = vector.shape_cast %46 : vector<8xf32> to vector<8x1xf32>
    %48 = arith.mulf %45, %45 : vector<8x384xf32>
    %cst_16 = arith.constant dense<0.000000e+00> : vector<8xf32>
    %49 = vector.multi_reduction <add>, %48, %cst_16 [1] : vector<8x384xf32> to vector<8xf32>
    %50 = vector.shape_cast %49 : vector<8xf32> to vector<8x1xf32>
    %cst_17 = arith.constant 0.00333333341 : f32
    %51 = vector.broadcast %cst_17 : f32 to vector<8x1xf32>
    %52 = arith.mulf %47, %51 : vector<8x1xf32>
    %cst_18 = arith.constant 0.00333333341 : f32
    %53 = vector.broadcast %cst_18 : f32 to vector<8x1xf32>
    %54 = arith.mulf %50, %53 : vector<8x1xf32>
    %55 = arith.mulf %52, %52 : vector<8x1xf32>
    %56 = arith.subf %54, %55 : vector<8x1xf32>
    %cst_19 = arith.constant 0.000000e+00 : f32
    %57 = vector.broadcast %cst_19 : f32 to vector<8x1xf32>
    %58 = arith.maximumf %56, %57 : vector<8x1xf32>
    %59 = vector.broadcast %52 : vector<8x1xf32> to vector<8x384xf32>
    %60 = arith.subf %45, %59 : vector<8x384xf32>
    %cst_20 = arith.constant 9.99999974E-6 : f32
    %61 = vector.broadcast %cst_20 : f32 to vector<8x1xf32>
    %62 = arith.addf %58, %61 : vector<8x1xf32>
    %63 = math.rsqrt %62 : vector<8x1xf32>
    %64 = vector.broadcast %63 : vector<8x1xf32> to vector<8x384xf32>
    %65 = arith.mulf %60, %64 : vector<8x384xf32>
    %66 = vector.broadcast %5 : vector<1x384xf32> to vector<8x384xf32>
    %67 = arith.mulf %65, %66 : vector<8x384xf32>
    %68 = vector.broadcast %6 : vector<1x384xf32> to vector<8x384xf32>
    %69 = arith.addf %67, %68 : vector<8x384xf32>
    %cst_21 = arith.constant 0.000000e+00 : f32
    %70 = vector.broadcast %cst_21 : f32 to vector<8x384xf32>
    %71 = arith.maximumf %69, %70 : vector<8x384xf32>
    %72 = arith.truncf %71 : vector<8x384xf32> to vector<8x384xbf16>
    %73 = arith.truncf %7 : vector<1x384xf32> to vector<1x384xbf16>
    %cst_22 = arith.constant dense<0.000000e+00> : vector<1x8xf32>
    %74 = tpu.matmul %73, %72, %cst_22 {dimension_numbers = #tpu.dot_dimension_numbers<[1], [1], [0], [0], [0, 0, 1, 0], [], []>} : vector<1x384xbf16>, vector<8x384xbf16>, vector<1x8xf32> -> vector<1x8xf32>
    %75 = vector.broadcast %8 : vector<1x1xf32> to vector<1x8xf32>
    %76 = arith.addf %74, %75 : vector<1x8xf32>
    %c0_23 = arith.constant 0 : index
    %c0_24 = arith.constant 0 : index
    %77 = vector.load %arg5[%c0_23, %c0_24] : memref<1x8xf32, #tpu.memory_space<vmem>>, vector<1x8xf32>
    tpu.vector_store %arg5[%c0_23, %c0_24], %76 {strides = array<i32>} : memref<1x8xf32, #tpu.memory_space<vmem>>, vector<1x8xf32>,
    return
  }
  func.func @transform_0(%arg0: i32) -> (i32, i32) {
    %c0_i32 = arith.constant 0 : i32
    %c0_i32_0 = arith.constant 0 : i32
    return %arg0, %c0_i32 : i32, i32
  }
  func.func @transform_1(%arg0: i32) -> (i32, i32) {
    %c0_i32 = arith.constant 0 : i32
    %c0_i32_0 = arith.constant 0 : i32
    %c0_i32_1 = arith.constant 0 : i32
    return %c0_i32, %c0_i32_0 : i32, i32
  }
  func.func @transform_2(%arg0: i32) -> (i32, i32) {
    %c0_i32 = arith.constant 0 : i32
    %c0_i32_0 = arith.constant 0 : i32
    %c0_i32_1 = arith.constant 0 : i32
    return %c0_i32, %c0_i32_0 : i32, i32
  }
  func.func @transform_3(%arg0: i32) -> (i32, i32) {
    %c0_i32 = arith.constant 0 : i32
    %c0_i32_0 = arith.constant 0 : i32
    %c0_i32_1 = arith.constant 0 : i32
    return %c0_i32, %c0_i32_0 : i32, i32
  }
  func.func @transform_4(%arg0: i32) -> (i32, i32) {
    %c0_i32 = arith.constant 0 : i32
    %c0_i32_0 = arith.constant 0 : i32
    return %c0_i32, %arg0 : i32, i32
  }
}

</mosaic_0001>

<llo_original>
// kernel: tpu_custom_call.1
$region0: #{tpu_custom_call.1}
  #allocation0 [shape = 'u32[]', space=smem, size = 0x4, offset = 0x4, fixed_abs, tag = 'smem constant byte address 0x4 - core index']
  #allocation1 [shape = 'u32[144,128]{1,0:T(1,128)}', space=vmem, size = 0x12000, scoped, tag = 'internal scratch']
  %s0 = inlined_call_operand.hbm [shape: f32[8,32], index: 0, kind: input, shape index: {}]
  %s1 = inlined_call_operand.hbm [shape: bf16[32,384], index: 1, kind: input, shape index: {}]
  %s2 = inlined_call_operand.hbm [shape: bf16[384,384], index: 2, kind: input, shape index: {}]
  %s3 = inlined_call_operand.hbm [shape: f32[8,384], index: 3, kind: input, shape index: {}]
  %s4 = inlined_call_operand.hbm [shape: f32[1,8], index: 4, kind: output, shape index: {}]
  %s5 = sld [smem:[#allocation0]]
  $region42: #{tpu_custom_call.1} parent=0
    _
  %s7 = ssub.s32 1, %s5
  %s8 = scalar_select 0, %s7, %s5
  $region1: #{tpu_custom_call.1} parent=0
    #allocation2 [shape = 'u8[4096]{0}', space=vmem, size = 0x1000, scoped, tag = 'input window, operand 0, single buffered']
    #allocation3 [shape = 's32[1]{0}', space=sflag, size = 0x4, scoped, tag = 'scoped memory for tpu_custom_call.1']
    #allocation4 [shape = 's32[1]{0}', space=sflag, size = 0x4, scoped, tag = 'scoped memory for tpu_custom_call.1']
    #allocation5 [shape = 'u8[24576]{0}', space=vmem, size = 0x6000, scoped, tag = 'input window, operand 1, single buffered']
    #allocation6 [shape = 's32[1]{0}', space=sflag, size = 0x4, scoped, tag = 'scoped memory for tpu_custom_call.1']
    #allocation7 [shape = 'u8[294912]{0}', space=vmem, size = 0x48000, scoped, tag = 'input window, operand 2, single buffered']
    #allocation8 [shape = 'u8[12288]{0}', space=vmem, size = 0x3000, scoped, tag = 'input window, operand 3, single buffered']
    #allocation9 [shape = 's32[1]{0}', space=sflag, size = 0x4, scoped, tag = 'scoped memory for tpu_custom_call.1']
    #allocation10 [shape = 'u8[512]{0}', space=vmem, size = 0x400, scoped, tag = 'output window, operand 0, single buffered']
    %9 = vsyncpa [#allocation3], 0
    %10 = vsyncpa [#allocation6], 0
    %11 = vsyncpa [#allocation9], 0
    %12 = vsyncpa [#allocation4], 0
    // Predicated region
    $region2: #{tpu_custom_call.1} parent=1 // pred_check
      _
    $region3: #{tpu_custom_call.1} parent=1 // pred_check_branch
      %14 = sbr.rel (0) target = $region5
    $region4: #{tpu_custom_call.1} parent=1 // pred_region
      %s16 = ssub.s32 128, 128
      %17 = vsyncadd [#allocation3], %s16
      %s19 = sshll.u32 [#allocation2], 4
      %s20 = int_to_ptr.vmem [resolvable:$true] %s19
      %22 = dma.hbm_to_vmem [thread:$0]  %s0, 128, %s20, [#allocation3]
    $region5: #{tpu_custom_call.1} parent=1 // pred_fallthru
      _
    // Predicated region
    $region6: #{tpu_custom_call.1} parent=1 // pred_check
      _
    $region7: #{tpu_custom_call.1} parent=1 // pred_check_branch
      %24 = sbr.rel (0) target = $region9
    $region8: #{tpu_custom_call.1} parent=1 // pred_region
      %s26 = ssub.s32 768, 768
      %27 = vsyncadd [#allocation6], %s26
      %s28 = sshll.u32 [#allocation5], 4
      %s29 = int_to_ptr.vmem [resolvable:$true] %s28
      %34 = dma.hbm_to_vmem [thread:$0]  %s1, 768, %s29, [#allocation6], 192, 192, 12
    $region9: #{tpu_custom_call.1} parent=1 // pred_fallthru
      _
    // Predicated region
    $region10: #{tpu_custom_call.1} parent=1 // pred_check
      _
    $region11: #{tpu_custom_call.1} parent=1 // pred_check_branch
      %36 = sbr.rel (0) target = $region13
    $region12: #{tpu_custom_call.1} parent=1 // pred_region
      %s38 = ssub.s32 9216, 9216
      %39 = vsyncadd [#allocation6], %s38
      %s40 = sshll.u32 [#allocation7], 4
      %s41 = int_to_ptr.vmem [resolvable:$true] %s40
      %46 = dma.hbm_to_vmem [thread:$0]  %s2, 9216, %s41, [#allocation6], 192, 192, 12
    $region13: #{tpu_custom_call.1} parent=1 // pred_fallthru
      _
    // Predicated region
    $region14: #{tpu_custom_call.1} parent=1 // pred_check
      _
    $region15: #{tpu_custom_call.1} parent=1 // pred_check_branch
      %48 = sbr.rel (0) target = $region17
    $region16: #{tpu_custom_call.1} parent=1 // pred_region
      %s50 = ssub.s32 384, 384
      %51 = vsyncadd [#allocation9], %s50
      %s53 = sshll.u32 [#allocation8], 4
      %s54 = int_to_ptr.vmem [resolvable:$true] %s53
      %56 = dma.hbm_to_vmem [thread:$0]  %s3, 384, %s54, [#allocation9]
    $region17: #{tpu_custom_call.1} parent=1 // pred_fallthru
      _
    // Predicated region
    $region18: #{tpu_custom_call.1} parent=1 // pred_check
      _
    $region19: #{tpu_custom_call.1} parent=1 // pred_check_branch
      %58 = sbr.rel (0) target = $region21
    $region20: #{tpu_custom_call.1} parent=1 // pred_region
      %59 = dma.done [#allocation3], 128
    $region21: #{tpu_custom_call.1} parent=1 // pred_fallthru
      _
    // Predicated region
    $region22: #{tpu_custom_call.1} parent=1 // pred_check
      _
    $region23: #{tpu_custom_call.1} parent=1 // pred_check_branch
      %61 = sbr.rel (0) target = $region25
    $region24: #{tpu_custom_call.1} parent=1 // pred_region
      %62 = dma.done [#allocation6], 768
    $region25: #{tpu_custom_call.1} parent=1 // pred_fallthru
      _
    // Predicated region
    $region26: #{tpu_custom_call.1} parent=1 // pred_check
      _
    $region27: #{tpu_custom_call.1} parent=1 // pred_check_branch
      %64 = sbr.rel (0) target = $region29
    $region28: #{tpu_custom_call.1} parent=1 // pred_region
      %65 = dma.done [#allocation6], 9216
    $region29: #{tpu_custom_call.1} parent=1 // pred_fallthru
      _
    // Predicated region
    $region30: #{tpu_custom_call.1} parent=1 // pred_check
      _
    $region31: #{tpu_custom_call.1} parent=1 // pred_check_branch
      %67 = sbr.rel (0) target = $region33
    $region32: #{tpu_custom_call.1} parent=1 // pred_region
      %68 = dma.done [#allocation9], 384
    $region33: #{tpu_custom_call.1} parent=1 // pred_fallthru
      _
    %v70 = vld [vmem:[#allocation8] sm:$0xff]
    %v71 = vld [vmem:[#allocation8 + $0x8] sm:$0xff]
    %v72 = vld [vmem:[#allocation8 + $0x10] sm:$0xff]
    %v73 = vld [vmem:[#allocation2] sm:$0xff]
    %v74 = vpack.c.bf16 %v73, %v73
    %v75 = vld [vmem:[#allocation5] sm:$0xff]
    %v76 = vld [vmem:[#allocation5 + $0x8] sm:$0xf]
    %v77 = vld [vmem:[#allocation5 + $0xc] sm:$0xff]
    %v78 = vld [vmem:[#allocation5 + $0x14] sm:$0xf]
    %v79 = vld [vmem:[#allocation5 + $0x18] sm:$0xff]
    %v80 = vld [vmem:[#allocation5 + $0x20] sm:$0xf]
    %v81 = vld [vmem:[#allocation5 + $0x24] sm:$0xff]
    %v82 = vld [vmem:[#allocation5 + $0x2c] sm:$0xf]
    %v83 = vlaneseq
    %v84 = vshrl.u32 %v83, 7
    %v85 = vsub.s32 0, %v84
    %v86 = vrot.slane %v70, %v85
    %v87 = vlaneseq
    %v88 = vshrl.u32 %v87, 7
    %v89 = vsub.s32 0, %v88
    %v90 = vrot.slane %v71, %v89
    %v91 = vlaneseq
    %v92 = vshrl.u32 %v91, 7
    %v93 = vsub.s32 0, %v92
    %v94 = vrot.slane %v72, %v93
    %v103 = vunpack.c.l.b16 %v75
    %v104 = vunpack.c.h.b16 %v75
    %v105 = vunpack.c.l.b16 %v76
    %v106 = vunpack.c.l.b16 %v77
    %v107 = vunpack.c.h.b16 %v77
    %v108 = vunpack.c.l.b16 %v78
    %v109 = vunpack.c.l.b16 %v79
    %v110 = vunpack.c.h.b16 %v79
    %v111 = vunpack.c.l.b16 %v80
    %v112 = vunpack.c.l.b16 %v81
    %v113 = vunpack.c.h.b16 %v81
    %v114 = vunpack.c.l.b16 %v82
    %v115 = vpack.c.b16 %v106, %v103
    %v116 = vpack.c.b16 %v107, %v104
    %v117 = vpack.c.b16 %v108, %v105
    %v118 = vpack.c.b16 %v112, %v109
    %v119 = vpack.c.b16 %v113, %v110
    %v120 = vpack.c.b16 %v114, %v111
    %vm127 = vcmask 261120
    %v129 = vsel %vm127, %v74, 0
    %131 = vmatprep.subr.bf16.mxu0 %v116
    %132 = vmatpush1.bf16.msra.mxu0 %v115
    %133 = vmatprep.subr.bf16.mxu0 %v119
    %134 = vmatpush1.bf16.msra.mxu0 %v118
    %135 = vmatprep.subr.bf16.mxu0 0
    %136 = vmatpush1.bf16.msra.mxu0 0
    %137 = vmatprep.subr.bf16.mxu0 0
    %138 = vmatpush1.bf16.msra.mxu0 0
    %139 = vmatprep.subr.bf16.mxu0 0
    %140 = vmatpush1.bf16.msra.mxu0 0
    %141 = vmatprep.subr.bf16.mxu0 0
    %142 = vmatpush1.bf16.msra.mxu0 0
    %143 = vmatprep.subr.bf16.mxu0 0
    %144 = vmatpush1.bf16.msra.mxu0 0
    %145 = vmatprep.subr.bf16.mxu0 0
    %146 = vmatpush1.bf16.msra.mxu0 0
    %147 = vmatprep.subr.bf16.mxu0 0
    %148 = vmatpush1.bf16.msra.mxu0 0
    %149 = vmatprep.subr.bf16.mxu0 0
    %150 = vmatpush1.bf16.msra.mxu0 0
    %151 = vmatprep.subr.bf16.mxu0 0
    %152 = vmatpush1.bf16.msra.mxu0 0
    %153 = vmatprep.subr.bf16.mxu0 0
    %154 = vmatpush1.bf16.msra.mxu0 0
    %155 = vmatprep.subr.bf16.mxu0 0
    %156 = vmatpush1.bf16.msra.mxu0 0
    %157 = vmatprep.subr.bf16.mxu0 0
    %158 = vmatpush1.bf16.msra.mxu0 0
    %159 = vmatprep.subr.bf16.mxu0 0
    %160 = vmatpush1.bf16.msra.mxu0 0
    %161 = vmatprep.subr.bf16.mxu0 0
    %162 = vmatpush1.bf16.msra.mxu0 0
    %163 = vmatprep.mubr.bf16.mxu0 0
    %164 = vmatmul.mubr.bf16.gmra.mrb[0].mxu0 %v129
    %v165 = vpop.f32.mrb[0].mxu0
    %v166 = vadd.f32 %v86, %v165
    %v167 = vpop.f32.mrb[0].mxu0
    %v168 = vadd.f32 %v90, %v167
    %v169 = vpop.f32.mrb[0].mxu0
    %v170 = vpop.f32.mrb[0].mxu0
    %171 = vdwg.mxu0
    %172 = vmatprep.subr.bf16.mxu0 0
    %173 = vmatpush1.bf16.msra.mxu0 %v117
    %174 = vmatprep.subr.bf16.mxu0 0
    %175 = vmatpush1.bf16.msra.mxu0 %v120
    %176 = vmatprep.subr.bf16.mxu0 0
    %177 = vmatpush1.bf16.msra.mxu0 0
    %178 = vmatprep.subr.bf16.mxu0 0
    %179 = vmatpush1.bf16.msra.mxu0 0
    %180 = vmatprep.subr.bf16.mxu0 0
    %181 = vmatpush1.bf16.msra.mxu0 0
    %182 = vmatprep.subr.bf16.mxu0 0
    %183 = vmatpush1.bf16.msra.mxu0 0
    %184 = vmatprep.subr.bf16.mxu0 0
    %185 = vmatpush1.bf16.msra.mxu0 0
    %186 = vmatprep.subr.bf16.mxu0 0
    %187 = vmatpush1.bf16.msra.mxu0 0
    %188 = vmatprep.subr.bf16.mxu0 0
    %189 = vmatpush1.bf16.msra.mxu0 0
    %190 = vmatprep.subr.bf16.mxu0 0
    %191 = vmatpush1.bf16.msra.mxu0 0
    %192 = vmatprep.subr.bf16.mxu0 0
    %193 = vmatpush1.bf16.msra.mxu0 0
    %194 = vmatprep.subr.bf16.mxu0 0
    %195 = vmatpush1.bf16.msra.mxu0 0
    %196 = vmatprep.subr.bf16.mxu0 0
    %197 = vmatpush1.bf16.msra.mxu0 0
    %198 = vmatprep.subr.bf16.mxu0 0
    %199 = vmatpush1.bf16.msra.mxu0 0
    %200 = vmatprep.subr.bf16.mxu0 0
    %201 = vmatpush1.bf16.msra.mxu0 0
    %202 = vmatprep.subr.bf16.mxu0 0
    %203 = vmatpush1.bf16.msra.mxu0 0
    %204 = vmatprep.mubr.bf16.mxu0 0
    %205 = vmatmul.mubr.bf16.gmra.mrb[0].mxu0 %v129
    %v206 = vpop.f32.mrb[0].mxu0
    %v207 = vadd.f32 %v94, %v206
    %v208 = vpop.f32.mrb[0].mxu0
    %v209 = vpop.f32.mrb[0].mxu0
    %v210 = vpop.f32.mrb[0].mxu0
    %211 = vdwg.mxu0
    %v212 = vadd.f32 %v166, %v168
    %v213 = vadd.f32 %v212, %v207
    %214 = vadd.xlane.f32.xlu0 %v213
    %v215 = vpop.xlane.xlu0 %214
    %v216 = vmul.f32 %v166, %v166
    %v217 = vmul.f32 %v168, %v168
    %v218 = vmul.f32 %v207, %v207
    %v219 = vadd.f32 %v216, %v217
    %v220 = vadd.f32 %v219, %v218
    %221 = vadd.xlane.f32.xlu0 %v220
    %v222 = vpop.xlane.xlu0 %221
    %v223 = vmul.f32 %v215, 0.0033333334
    %v224 = vmul.f32 %v222, 0.0033333334
    %v225 = vmul.f32 %v223, %v223
    %v226 = vsub.f32 %v224, %v225
    %v227 = vmax.f32 %v226, 0.0
    %v228 = vsub.f32 %v166, %v223
    %v229 = vsub.f32 %v168, %v223
    %v230 = vsub.f32 %v207, %v223
    %v231 = vadd.f32 %v227, 1e-05
    %v232 = vrsqrt.pop %v231
    %v233 = vmul.f32 %v228, %v232
    %v234 = vmul.f32 %v229, %v232
    %v235 = vmul.f32 %v230, %v232
    %v236 = vlaneseq
    %v237 = vshrl.u32 %v236, 7
    %v238 = vsub.s32 1, %v237
    %v239 = vrot.slane %v70, %v238
    %v240 = vlaneseq
    %v241 = vshrl.u32 %v240, 7
    %v242 = vsub.s32 1, %v241
    %v243 = vrot.slane %v71, %v242
    %v244 = vlaneseq
    %v245 = vshrl.u32 %v244, 7
    %v246 = vsub.s32 1, %v245
    %v247 = vrot.slane %v72, %v246
    %v248 = vmul.f32 %v233, %v239
    %v249 = vmul.f32 %v234, %v243
    %v250 = vmul.f32 %v235, %v247
    %v251 = vlaneseq
    %v252 = vshrl.u32 %v251, 7
    %v253 = vsub.s32 2, %v252
    %v254 = vrot.slane %v70, %v253
    %v255 = vlaneseq
    %v256 = vshrl.u32 %v255, 7
    %v257 = vsub.s32 2, %v256
    %v258 = vrot.slane %v71, %v257
    %v259 = vlaneseq
    %v260 = vshrl.u32 %v259, 7
    %v261 = vsub.s32 2, %v260
    %v262 = vrot.slane %v72, %v261
    %v263 = vadd.f32 %v248, %v254
    %v264 = vadd.f32 %v249, %v258
    %v265 = vadd.f32 %v250, %v262
    %v266 = vmax.f32 %v263, 0.0
    %v267 = vmax.f32 %v264, 0.0
    %v268 = vmax.f32 %v265, 0.0
    %v269 = vpack.c.bf16 %v266, %v266
    %v270 = vpack.c.bf16 %v267, %v267
    %v271 = vpack.c.bf16 %v268, %v268
    %v272 = vld [vmem:[#allocation7] sm:$0xff]
    %v273 = vld [vmem:[#allocation7 + $0x8] sm:$0xf]
    %v274 = vld [vmem:[#allocation7 + $0xc] sm:$0xff]
    %v275 = vld [vmem:[#allocation7 + $0x14] sm:$0xf]
    %v276 = vld [vmem:[#allocation7 + $0x18] sm:$0xff]
    %v277 = vld [vmem:[#allocation7 + $0x20] sm:$0xf]
    %v278 = vld [vmem:[#allocation7 + $0x24] sm:$0xff]
    %v279 = vld [vmem:[#allocation7 + $0x2c] sm:$0xf]
    %v280 = vld [vmem:[#allocation7 + $0x30] sm:$0xff]
    %v281 = vld [vmem:[#allocation7 + $0x38] sm:$0xf]
    %v282 = vld [vmem:[#allocation7 + $0x3c] sm:$0xff]
    %v283 = vld [vmem:[#allocation7 + $0x44] sm:$0xf]
    %v284 = vld [vmem:[#allocation7 + $0x48] sm:$0xff]
    %v285 = vld [vmem:[#allocation7 + $0x50] sm:$0xf]
    %v286 = vld [vmem:[#allocation7 + $0x54] sm:$0xff]
    %v287 = vld [vmem:[#allocation7 + $0x5c] sm:$0xf]
    %v288 = vld [vmem:[#allocation7 + $0x60] sm:$0xff]
    %v289 = vld [vmem:[#allocation7 + $0x68] sm:$0xf]
    %v290 = vld [vmem:[#allocation7 + $0x6c] sm:$0xff]
    %v291 = vld [vmem:[#allocation7 + $0x74] sm:$0xf]
    %v292 = vld [vmem:[#allocation7 + $0x78] sm:$0xff]
    %v293 = vld [vmem:[#allocation7 + $0x80] sm:$0xf]
    %v294 = vld [vmem:[#allocation7 + $0x84] sm:$0xff]
    %v295 = vld [vmem:[#allocation7 + $0x8c] sm:$0xf]
    %v296 = vld [vmem:[#allocation7 + $0x90] sm:$0xff]
    %v297 = vld [vmem:[#allocation7 + $0x98] sm:$0xf]
    %v298 = vld [vmem:[#allocation7 + $0x9c] sm:$0xff]
    %v299 = vld [vmem:[#allocation7 + $0xa4] sm:$0xf]
    %v300 = vld [vmem:[#allocation7 + $0xa8] sm:$0xff]
    %v301 = vld [vmem:[#allocation7 + $0xb0] sm:$0xf]
    %v302 = vld [vmem:[#allocation7 + $0xb4] sm:$0xff]
    %v303 = vld [vmem:[#allocation7 + $0xbc] sm:$0xf]
    %v304 = vld [vmem:[#allocation7 + $0xc0] sm:$0xff]
    %v305 = vld [vmem:[#allocation7 + $0xc8] sm:$0xf]
    %v306 = vld [vmem:[#allocation7 + $0xcc] sm:$0xff]
    %v307 = vld [vmem:[#allocation7 + $0xd4] sm:$0xf]
    %v308 = vld [vmem:[#allocation7 + $0xd8] sm:$0xff]
    %v309 = vld [vmem:[#allocation7 + $0xe0] sm:$0xf]
    %v310 = vld [vmem:[#allocation7 + $0xe4] sm:$0xff]
    %v311 = vld [vmem:[#allocation7 + $0xec] sm:$0xf]
    %v312 = vld [vmem:[#allocation7 + $0xf0] sm:$0xff]
    %v313 = vld [vmem:[#allocation7 + $0xf8] sm:$0xf]
    %v314 = vld [vmem:[#allocation7 + $0xfc] sm:$0xff]
    %v315 = vld [vmem:[#allocation7 + $0x104] sm:$0xf]
    %v316 = vld [vmem:[#allocation7 + $0x108] sm:$0xff]
    %v317 = vld [vmem:[#allocation7 + $0x110] sm:$0xf]
    %v318 = vld [vmem:[#allocation7 + $0x114] sm:$0xff]
    %v319 = vld [vmem:[#allocation7 + $0x11c] sm:$0xf]
    %v320 = vld [vmem:[#allocation7 + $0x120] sm:$0xff]
    %v321 = vld [vmem:[#allocation7 + $0x128] sm:$0xf]
    %v322 = vld [vmem:[#allocation7 + $0x12c] sm:$0xff]
    %v323 = vld [vmem:[#allocation7 + $0x134] sm:$0xf]
    %v324 = vld [vmem:[#allocation7 + $0x138] sm:$0xff]
    %v325 = vld [vmem:[#allocation7 + $0x140] sm:$0xf]
    %v326 = vld [vmem:[#allocation7 + $0x144] sm:$0xff]
    %v327 = vld [vmem:[#allocation7 + $0x14c] sm:$0xf]
    %v328 = vld [vmem:[#allocation7 + $0x150] sm:$0xff]
    %v329 = vld [vmem:[#allocation7 + $0x158] sm:$0xf]
    %v330 = vld [vmem:[#allocation7 + $0x15c] sm:$0xff]
    %v331 = vld [vmem:[#allocation7 + $0x164] sm:$0xf]
    %v332 = vld [vmem:[#allocation7 + $0x168] sm:$0xff]
    %v333 = vld [vmem:[#allocation7 + $0x170] sm:$0xf]
    %v334 = vld [vmem:[#allocation7 + $0x174] sm:$0xff]
    %v335 = vld [vmem:[#allocation7 + $0x17c] sm:$0xf]
    %v336 = vld [vmem:[#allocation7 + $0x180] sm:$0xff]
    %v337 = vld [vmem:[#allocation7 + $0x188] sm:$0xf]
    %v338 = vld [vmem:[#allocation7 + $0x18c] sm:$0xff]
    %v339 = vld [vmem:[#allocation7 + $0x194] sm:$0xf]
    %v340 = vld [vmem:[#allocation7 + $0x198] sm:$0xff]
    %v341 = vld [vmem:[#allocation7 + $0x1a0] sm:$0xf]
    %v342 = vld [vmem:[#allocation7 + $0x1a4] sm:$0xff]
    %v343 = vld [vmem:[#allocation7 + $0x1ac] sm:$0xf]
    %v344 = vld [vmem:[#allocation7 + $0x1b0] sm:$0xff]
    %v345 = vld [vmem:[#allocation7 + $0x1b8] sm:$0xf]
    %v346 = vld [vmem:[#allocation7 + $0x1bc] sm:$0xff]
    %v347 = vld [vmem:[#allocation7 + $0x1c4] sm:$0xf]
    %v348 = vld [vmem:[#allocation7 + $0x1c8] sm:$0xff]
    %v349 = vld [vmem:[#allocation7 + $0x1d0] sm:$0xf]
    %v350 = vld [vmem:[#allocation7 + $0x1d4] sm:$0xff]
    %v351 = vld [vmem:[#allocation7 + $0x1dc] sm:$0xf]
    %v352 = vld [vmem:[#allocation7 + $0x1e0] sm:$0xff]
    %v353 = vld [vmem:[#allocation7 + $0x1e8] sm:$0xf]
    %v354 = vld [vmem:[#allocation7 + $0x1ec] sm:$0xff]
    %v355 = vld [vmem:[#allocation7 + $0x1f4] sm:$0xf]
    %v356 = vld [vmem:[#allocation7 + $0x1f8] sm:$0xff]
    %v357 = vld [vmem:[#allocation7 + $0x200] sm:$0xf]
    %v358 = vld [vmem:[#allocation7 + $0x204] sm:$0xff]
    %v359 = vld [vmem:[#allocation7 + $0x20c] sm:$0xf]
    %v360 = vld [vmem:[#allocation7 + $0x210] sm:$0xff]
    %v361 = vld [vmem:[#allocation7 + $0x218] sm:$0xf]
    %v362 = vld [vmem:[#allocation7 + $0x21c] sm:$0xff]
    %v363 = vld [vmem:[#allocation7 + $0x224] sm:$0xf]
    %v364 = vld [vmem:[#allocation7 + $0x228] sm:$0xff]
    %v365 = vld [vmem:[#allocation7 + $0x230] sm:$0xf]
    %v366 = vld [vmem:[#allocation7 + $0x234] sm:$0xff]
    %v367 = vld [vmem:[#allocation7 + $0x23c] sm:$0xf]
    %v368 = vlaneseq
    %v369 = vshrl.u32 %v368, 7
    %v370 = vsub.s32 3, %v369
    %v371 = vrot.slane %v70, %v370
    %v372 = vlaneseq
    %v373 = vshrl.u32 %v372, 7
    %v374 = vsub.s32 3, %v373
    %v375 = vrot.slane %v71, %v374
    %v376 = vlaneseq
    %v377 = vshrl.u32 %v376, 7
    %v378 = vsub.s32 3, %v377
    %v379 = vrot.slane %v72, %v378
    %v476 = vunpack.c.l.b16 %v272
    %v477 = vunpack.c.h.b16 %v272
    %v478 = vunpack.c.l.b16 %v273
    %v479 = vunpack.c.l.b16 %v274
    %v480 = vunpack.c.h.b16 %v274
    %v481 = vunpack.c.l.b16 %v275
    %v482 = vunpack.c.l.b16 %v276
    %v483 = vunpack.c.h.b16 %v276
    %v484 = vunpack.c.l.b16 %v277
    %v485 = vunpack.c.l.b16 %v278
    %v486 = vunpack.c.h.b16 %v278
    %v487 = vunpack.c.l.b16 %v279
    %v488 = vunpack.c.l.b16 %v280
    %v489 = vunpack.c.h.b16 %v280
    %v490 = vunpack.c.l.b16 %v281
    %v491 = vunpack.c.l.b16 %v282
    %v492 = vunpack.c.h.b16 %v282
    %v493 = vunpack.c.l.b16 %v283
    %v494 = vunpack.c.l.b16 %v284
    %v495 = vunpack.c.h.b16 %v284
    %v496 = vunpack.c.l.b16 %v285
    %v497 = vunpack.c.l.b16 %v286
    %v498 = vunpack.c.h.b16 %v286
    %v499 = vunpack.c.l.b16 %v287
    %v500 = vunpack.c.l.b16 %v288
    %v501 = vunpack.c.h.b16 %v288
    %v502 = vunpack.c.l.b16 %v289
    %v503 = vunpack.c.l.b16 %v290
    %v504 = vunpack.c.h.b16 %v290
    %v505 = vunpack.c.l.b16 %v291
    %v506 = vunpack.c.l.b16 %v292
    %v507 = vunpack.c.h.b16 %v292
    %v508 = vunpack.c.l.b16 %v293
    %v509 = vunpack.c.l.b16 %v294
    %v510 = vunpack.c.h.b16 %v294
    %v511 = vunpack.c.l.b16 %v295
    %v512 = vunpack.c.l.b16 %v296
    %v513 = vunpack.c.h.b16 %v296
    %v514 = vunpack.c.l.b16 %v297
    %v515 = vunpack.c.l.b16 %v298
    %v516 = vunpack.c.h.b16 %v298
    %v517 = vunpack.c.l.b16 %v299
    %v518 = vunpack.c.l.b16 %v300
    %v519 = vunpack.c.h.b16 %v300
    %v520 = vunpack.c.l.b16 %v301
    %v521 = vunpack.c.l.b16 %v302
    %v522 = vunpack.c.h.b16 %v302
    %v523 = vunpack.c.l.b16 %v303
    %v524 = vunpack.c.l.b16 %v304
    %v525 = vunpack.c.h.b16 %v304
    %v526 = vunpack.c.l.b16 %v305
    %v527 = vunpack.c.l.b16 %v306
    %v528 = vunpack.c.h.b16 %v306
    %v529 = vunpack.c.l.b16 %v307
    %v530 = vunpack.c.l.b16 %v308
    %v531 = vunpack.c.h.b16 %v308
    %v532 = vunpack.c.l.b16 %v309
    %v533 = vunpack.c.l.b16 %v310
    %v534 = vunpack.c.h.b16 %v310
    %v535 = vunpack.c.l.b16 %v311
    %v536 = vunpack.c.l.b16 %v312
    %v537 = vunpack.c.h.b16 %v312
    %v538 = vunpack.c.l.b16 %v313
    %v539 = vunpack.c.l.b16 %v314
    %v540 = vunpack.c.h.b16 %v314
    %v541 = vunpack.c.l.b16 %v315
    %v542 = vunpack.c.l.b16 %v316
    %v543 = vunpack.c.h.b16 %v316
    %v544 = vunpack.c.l.b16 %v317
    %v545 = vunpack.c.l.b16 %v318
    %v546 = vunpack.c.h.b16 %v318
    %v547 = vunpack.c.l.b16 %v319
    %v548 = vunpack.c.l.b16 %v320
    %v549 = vunpack.c.h.b16 %v320
    %v550 = vunpack.c.l.b16 %v321
    %v551 = vunpack.c.l.b16 %v322
    %v552 = vunpack.c.h.b16 %v322
    %v553 = vunpack.c.l.b16 %v323
    %v554 = vunpack.c.l.b16 %v324
    %v555 = vunpack.c.h.b16 %v324
    %v556 = vunpack.c.l.b16 %v325
    %v557 = vunpack.c.l.b16 %v326
    %v558 = vunpack.c.h.b16 %v326
    %v559 = vunpack.c.l.b16 %v327
    %v560 = vunpack.c.l.b16 %v328
    %v561 = vunpack.c.h.b16 %v328
    %v562 = vunpack.c.l.b16 %v329
    %v563 = vunpack.c.l.b16 %v330
    %v564 = vunpack.c.h.b16 %v330
    %v565 = vunpack.c.l.b16 %v331
    %v566 = vunpack.c.l.b16 %v332
    %v567 = vunpack.c.h.b16 %v332
    %v568 = vunpack.c.l.b16 %v333
    %v569 = vunpack.c.l.b16 %v334
    %v570 = vunpack.c.h.b16 %v334
    %v571 = vunpack.c.l.b16 %v335
    %v572 = vunpack.c.l.b16 %v336
    %v573 = vunpack.c.h.b16 %v336
    %v574 = vunpack.c.l.b16 %v337
    %v575 = vunpack.c.l.b16 %v338
    %v576 = vunpack.c.h.b16 %v338
    %v577 = vunpack.c.l.b16 %v339
    %v578 = vunpack.c.l.b16 %v340
    %v579 = vunpack.c.h.b16 %v340
    %v580 = vunpack.c.l.b16 %v341
    %v581 = vunpack.c.l.b16 %v342
    %v582 = vunpack.c.h.b16 %v342
    %v583 = vunpack.c.l.b16 %v343
    %v584 = vunpack.c.l.b16 %v344
    %v585 = vunpack.c.h.b16 %v344
    %v586 = vunpack.c.l.b16 %v345
    %v587 = vunpack.c.l.b16 %v346
    %v588 = vunpack.c.h.b16 %v346
    %v589 = vunpack.c.l.b16 %v347
    %v590 = vunpack.c.l.b16 %v348
    %v591 = vunpack.c.h.b16 %v348
    %v592 = vunpack.c.l.b16 %v349
    %v593 = vunpack.c.l.b16 %v350
    %v594 = vunpack.c.h.b16 %v350
    %v595 = vunpack.c.l.b16 %v351
    %v596 = vunpack.c.l.b16 %v352
    %v597 = vunpack.c.h.b16 %v352
    %v598 = vunpack.c.l.b16 %v353
    %v599 = vunpack.c.l.b16 %v354
    %v600 = vunpack.c.h.b16 %v354
    %v601 = vunpack.c.l.b16 %v355
    %v602 = vunpack.c.l.b16 %v356
    %v603 = vunpack.c.h.b16 %v356
    %v604 = vunpack.c.l.b16 %v357
    %v605 = vunpack.c.l.b16 %v358
    %v606 = vunpack.c.h.b16 %v358
    %v607 = vunpack.c.l.b16 %v359
    %v608 = vunpack.c.l.b16 %v360
    %v609 = vunpack.c.h.b16 %v360
    %v610 = vunpack.c.l.b16 %v361
    %v611 = vunpack.c.l.b16 %v362
    %v612 = vunpack.c.h.b16 %v362
    %v613 = vunpack.c.l.b16 %v363
    %v614 = vunpack.c.l.b16 %v364
    %v615 = vunpack.c.h.b16 %v364
    %v616 = vunpack.c.l.b16 %v365
    %v617 = vunpack.c.l.b16 %v366
    %v618 = vunpack.c.h.b16 %v366
    %v619 = vunpack.c.l.b16 %v367
    %v620 = vpack.c.b16 %v479, %v476
    %v621 = vpack.c.b16 %v480, %v477
    %v622 = vpack.c.b16 %v481, %v478
    %v623 = vpack.c.b16 %v485, %v482
    %v624 = vpack.c.b16 %v486, %v483
    %v625 = vpack.c.b16 %v487, %v484
    %v626 = vpack.c.b16 %v491, %v488
    %v627 = vpack.c.b16 %v492, %v489
    %v628 = vpack.c.b16 %v493, %v490
    %v629 = vpack.c.b16 %v497, %v494
    %v630 = vpack.c.b16 %v498, %v495
    %v631 = vpack.c.b16 %v499, %v496
    %v632 = vpack.c.b16 %v503, %v500
    %v633 = vpack.c.b16 %v504, %v501
    %v634 = vpack.c.b16 %v505, %v502
    %v635 = vpack.c.b16 %v509, %v506
    %v636 = vpack.c.b16 %v510, %v507
    %v637 = vpack.c.b16 %v511, %v508
    %v638 = vpack.c.b16 %v515, %v512
    %v639 = vpack.c.b16 %v516, %v513
    %v640 = vpack.c.b16 %v517, %v514
    %v641 = vpack.c.b16 %v521, %v518
    %v642 = vpack.c.b16 %v522, %v519
    %v643 = vpack.c.b16 %v523, %v520
    %v644 = vpack.c.b16 %v527, %v524
    %v645 = vpack.c.b16 %v528, %v525
    %v646 = vpack.c.b16 %v529, %v526
    %v647 = vpack.c.b16 %v533, %v530
    %v648 = vpack.c.b16 %v534, %v531
    %v649 = vpack.c.b16 %v535, %v532
    %v650 = vpack.c.b16 %v539, %v536
    %v651 = vpack.c.b16 %v540, %v537
    %v652 = vpack.c.b16 %v541, %v538
    %v653 = vpack.c.b16 %v545, %v542
    %v654 = vpack.c.b16 %v546, %v543
    %v655 = vpack.c.b16 %v547, %v544
    %v656 = vpack.c.b16 %v551, %v548
    %v657 = vpack.c.b16 %v552, %v549
    %v658 = vpack.c.b16 %v553, %v550
    %v659 = vpack.c.b16 %v557, %v554
    %v660 = vpack.c.b16 %v558, %v555
    %v661 = vpack.c.b16 %v559, %v556
    %v662 = vpack.c.b16 %v563, %v560
    %v663 = vpack.c.b16 %v564, %v561
    %v664 = vpack.c.b16 %v565, %v562
    %v665 = vpack.c.b16 %v569, %v566
    %v666 = vpack.c.b16 %v570, %v567
    %v667 = vpack.c.b16 %v571, %v568
    %v668 = vpack.c.b16 %v575, %v572
    %v669 = vpack.c.b16 %v576, %v573
    %v670 = vpack.c.b16 %v577, %v574
    %v671 = vpack.c.b16 %v581, %v578
    %v672 = vpack.c.b16 %v582, %v579
    %v673 = vpack.c.b16 %v583, %v580
    %v674 = vpack.c.b16 %v587, %v584
    %v675 = vpack.c.b16 %v588, %v585
    %v676 = vpack.c.b16 %v589, %v586
    %v677 = vpack.c.b16 %v593, %v590
    %v678 = vpack.c.b16 %v594, %v591
    %v679 = vpack.c.b16 %v595, %v592
    %v680 = vpack.c.b16 %v599, %v596
    %v681 = vpack.c.b16 %v600, %v597
    %v682 = vpack.c.b16 %v601, %v598
    %v683 = vpack.c.b16 %v605, %v602
    %v684 = vpack.c.b16 %v606, %v603
    %v685 = vpack.c.b16 %v607, %v604
    %v686 = vpack.c.b16 %v611, %v608
    %v687 = vpack.c.b16 %v612, %v609
    %v688 = vpack.c.b16 %v613, %v610
    %v689 = vpack.c.b16 %v617, %v614
    %v690 = vpack.c.b16 %v618, %v615
    %v691 = vpack.c.b16 %v619, %v616
    %764 = vmatprep.subr.bf16.mxu0 %v621
    %765 = vmatpush1.bf16.msra.mxu0 %v620
    %766 = vmatprep.subr.bf16.mxu0 %v624
    %767 = vmatpush1.bf16.msra.mxu0 %v623
    %768 = vmatprep.subr.bf16.mxu0 %v627
    %769 = vmatpush1.bf16.msra.mxu0 %v626
    %770 = vmatprep.subr.bf16.mxu0 %v630
    %771 = vmatpush1.bf16.msra.mxu0 %v629
    %772 = vmatprep.subr.bf16.mxu0 %v633
    %773 = vmatpush1.bf16.msra.mxu0 %v632
    %774 = vmatprep.subr.bf16.mxu0 %v636
    %775 = vmatpush1.bf16.msra.mxu0 %v635
    %776 = vmatprep.subr.bf16.mxu0 %v639
    %777 = vmatpush1.bf16.msra.mxu0 %v638
    %778 = vmatprep.subr.bf16.mxu0 %v642
    %779 = vmatpush1.bf16.msra.mxu0 %v641
    %780 = vmatprep.subr.bf16.mxu0 %v645
    %781 = vmatpush1.bf16.msra.mxu0 %v644
    %782 = vmatprep.subr.bf16.mxu0 %v648
    %783 = vmatpush1.bf16.msra.mxu0 %v647
    %784 = vmatprep.subr.bf16.mxu0 %v651
    %785 = vmatpush1.bf16.msra.mxu0 %v650
    %786 = vmatprep.subr.bf16.mxu0 %v654
    %787 = vmatpush1.bf16.msra.mxu0 %v653
    %788 = vmatprep.subr.bf16.mxu0 %v657
    %789 = vmatpush1.bf16.msra.mxu0 %v656
    %790 = vmatprep.subr.bf16.mxu0 %v660
    %791 = vmatpush1.bf16.msra.mxu0 %v659
    %792 = vmatprep.subr.bf16.mxu0 %v663
    %793 = vmatpush1.bf16.msra.mxu0 %v662
    %794 = vmatprep.subr.bf16.mxu0 %v666
    %795 = vmatpush1.bf16.msra.mxu0 %v665
    %796 = vmatprep.mubr.bf16.mxu0 %v270
    %797 = vmatmul.mubr.bf16.gmra.mrb[0].mxu0 %v269
    %v798 = vpop.f32.mrb[0].mxu0
    %v799 = vadd.f32 %v371, %v798
    %v800 = vpop.f32.mrb[0].mxu0
    %v801 = vadd.f32 %v375, %v800
    %v802 = vpop.f32.mrb[0].mxu0
    %v803 = vpop.f32.mrb[0].mxu0
    %804 = vdwg.mxu0
    %805 = vmatprep.subr.bf16.mxu0 %v669
    %806 = vmatpush1.bf16.msra.mxu0 %v668
    %807 = vmatprep.subr.bf16.mxu0 %v672
    %808 = vmatpush1.bf16.msra.mxu0 %v671
    %809 = vmatprep.subr.bf16.mxu0 %v675
    %810 = vmatpush1.bf16.msra.mxu0 %v674
    %811 = vmatprep.subr.bf16.mxu0 %v678
    %812 = vmatpush1.bf16.msra.mxu0 %v677
    %813 = vmatprep.subr.bf16.mxu0 %v681
    %814 = vmatpush1.bf16.msra.mxu0 %v680
    %815 = vmatprep.subr.bf16.mxu0 %v684
    %816 = vmatpush1.bf16.msra.mxu0 %v683
    %817 = vmatprep.subr.bf16.mxu0 %v687
    %818 = vmatpush1.bf16.msra.mxu0 %v686
    %819 = vmatprep.subr.bf16.mxu0 %v690
    %820 = vmatpush1.bf16.msra.mxu0 %v689
    %821 = vmatprep.subr.bf16.mxu0 0
    %822 = vmatpush1.bf16.msra.mxu0 0
    %823 = vmatprep.subr.bf16.mxu0 0
    %824 = vmatpush1.bf16.msra.mxu0 0
    %825 = vmatprep.subr.bf16.mxu0 0
    %826 = vmatpush1.bf16.msra.mxu0 0
    %827 = vmatprep.subr.bf16.mxu0 0
    %828 = vmatpush1.bf16.msra.mxu0 0
    %829 = vmatprep.subr.bf16.mxu0 0
    %830 = vmatpush1.bf16.msra.mxu0 0
    %831 = vmatprep.subr.bf16.mxu0 0
    %832 = vmatpush1.bf16.msra.mxu0 0
    %833 = vmatprep.subr.bf16.mxu0 0
    %834 = vmatpush1.bf16.msra.mxu0 0
    %835 = vmatprep.subr.bf16.mxu0 0
    %836 = vmatpush1.bf16.msra.mxu0 0
    %837 = vmatprep.mubr.bf16.mxu0 0
    %838 = vmatmul.mubr.bf16.gmra.mrb[0].mxu0 %v271
    %v839 = vpop.f32.mrb[0].mxu0
    %v840 = vadd.f32 %v799, %v839
    %v841 = vpop.f32.mrb[0].mxu0
    %v842 = vadd.f32 %v801, %v841
    %v843 = vpop.f32.mrb[0].mxu0
    %v844 = vpop.f32.mrb[0].mxu0
    %845 = vdwg.mxu0
    %846 = vmatprep.subr.bf16.mxu0 0
    %847 = vmatpush1.bf16.msra.mxu0 %v622
    %848 = vmatprep.subr.bf16.mxu0 0
    %849 = vmatpush1.bf16.msra.mxu0 %v625
    %850 = vmatprep.subr.bf16.mxu0 0
    %851 = vmatpush1.bf16.msra.mxu0 %v628
    %852 = vmatprep.subr.bf16.mxu0 0
    %853 = vmatpush1.bf16.msra.mxu0 %v631
    %854 = vmatprep.subr.bf16.mxu0 0
    %855 = vmatpush1.bf16.msra.mxu0 %v634
    %856 = vmatprep.subr.bf16.mxu0 0
    %857 = vmatpush1.bf16.msra.mxu0 %v637
    %858 = vmatprep.subr.bf16.mxu0 0
    %859 = vmatpush1.bf16.msra.mxu0 %v640
    %860 = vmatprep.subr.bf16.mxu0 0
    %861 = vmatpush1.bf16.msra.mxu0 %v643
    %862 = vmatprep.subr.bf16.mxu0 0
    %863 = vmatpush1.bf16.msra.mxu0 %v646
    %864 = vmatprep.subr.bf16.mxu0 0
    %865 = vmatpush1.bf16.msra.mxu0 %v649
    %866 = vmatprep.subr.bf16.mxu0 0
    %867 = vmatpush1.bf16.msra.mxu0 %v652
    %868 = vmatprep.subr.bf16.mxu0 0
    %869 = vmatpush1.bf16.msra.mxu0 %v655
    %870 = vmatprep.subr.bf16.mxu0 0
    %871 = vmatpush1.bf16.msra.mxu0 %v658
    %872 = vmatprep.subr.bf16.mxu0 0
    %873 = vmatpush1.bf16.msra.mxu0 %v661
    %874 = vmatprep.subr.bf16.mxu0 0
    %875 = vmatpush1.bf16.msra.mxu0 %v664
    %876 = vmatprep.subr.bf16.mxu0 0
    %877 = vmatpush1.bf16.msra.mxu0 %v667
    %878 = vmatprep.mubr.bf16.mxu0 %v270
    %879 = vmatmul.mubr.bf16.gmra.mrb[0].mxu0 %v269
    %v880 = vpop.f32.mrb[0].mxu0
    %v881 = vadd.f32 %v379, %v880
    %v882 = vpop.f32.mrb[0].mxu0
    %v883 = vpop.f32.mrb[0].mxu0
    %v884 = vpop.f32.mrb[0].mxu0
    %885 = vdwg.mxu0
    %886 = vmatprep.subr.bf16.mxu0 0
    %887 = vmatpush1.bf16.msra.mxu0 %v670
    %888 = vmatprep.subr.bf16.mxu0 0
    %889 = vmatpush1.bf16.msra.mxu0 %v673
    %890 = vmatprep.subr.bf16.mxu0 0
    %891 = vmatpush1.bf16.msra.mxu0 %v676
    %892 = vmatprep.subr.bf16.mxu0 0
    %893 = vmatpush1.bf16.msra.mxu0 %v679
    %894 = vmatprep.subr.bf16.mxu0 0
    %895 = vmatpush1.bf16.msra.mxu0 %v682
    %896 = vmatprep.subr.bf16.mxu0 0
    %897 = vmatpush1.bf16.msra.mxu0 %v685
    %898 = vmatprep.subr.bf16.mxu0 0
    %899 = vmatpush1.bf16.msra.mxu0 %v688
    %900 = vmatprep.subr.bf16.mxu0 0
    %901 = vmatpush1.bf16.msra.mxu0 %v691
    %902 = vmatprep.subr.bf16.mxu0 0
    %903 = vmatpush1.bf16.msra.mxu0 0
    %904 = vmatprep.subr.bf16.mxu0 0
    %905 = vmatpush1.bf16.msra.mxu0 0
    %906 = vmatprep.subr.bf16.mxu0 0
    %907 = vmatpush1.bf16.msra.mxu0 0
    %908 = vmatprep.subr.bf16.mxu0 0
    %909 = vmatpush1.bf16.msra.mxu0 0
    %910 = vmatprep.subr.bf16.mxu0 0
    %911 = vmatpush1.bf16.msra.mxu0 0
    %912 = vmatprep.subr.bf16.mxu0 0
    %913 = vmatpush1.bf16.msra.mxu0 0
    %914 = vmatprep.subr.bf16.mxu0 0
    %915 = vmatpush1.bf16.msra.mxu0 0
    %916 = vmatprep.subr.bf16.mxu0 0
    %917 = vmatpush1.bf16.msra.mxu0 0
    %918 = vmatprep.mubr.bf16.mxu0 0
    %919 = vmatmul.mubr.bf16.gmra.mrb[0].mxu0 %v271
    %v920 = vpop.f32.mrb[0].mxu0
    %v921 = vadd.f32 %v881, %v920
    %v922 = vpop.f32.mrb[0].mxu0
    %v923 = vpop.f32.mrb[0].mxu0
    %v924 = vpop.f32.mrb[0].mxu0
    %925 = vdwg.mxu0
    %v926 = vadd.f32 %v840, %v842
    %v927 = vadd.f32 %v926, %v921
    %928 = vadd.xlane.f32.xlu0 %v927
    %v929 = vpop.xlane.xlu0 %928
    %v930 = vmul.f32 %v840, %v840
    %v931 = vmul.f32 %v842, %v842
    %v932 = vmul.f32 %v921, %v921
    %v933 = vadd.f32 %v930, %v931
    %v934 = vadd.f32 %v933, %v932
    %935 = vadd.xlane.f32.xlu0 %v934
    %v936 = vpop.xlane.xlu0 %935
    %v937 = vmul.f32 %v929, 0.0033333334
    %v938 = vmul.f32 %v936, 0.0033333334
    %v939 = vmul.f32 %v937, %v937
    %v940 = vsub.f32 %v938, %v939
    %v941 = vmax.f32 %v940, 0.0
    %v942 = vsub.f32 %v840, %v937
    %v943 = vsub.f32 %v842, %v937
    %v944 = vsub.f32 %v921, %v937
    %v945 = vadd.f32 %v941, 1e-05
    %v946 = vrsqrt.pop %v945
    %v947 = vmul.f32 %v942, %v946
    %v948 = vmul.f32 %v943, %v946
    %v949 = vmul.f32 %v944, %v946
    %v950 = vlaneseq
    %v951 = vshrl.u32 %v950, 7
    %v952 = vsub.s32 4, %v951
    %v953 = vrot.slane %v70, %v952
    %v954 = vlaneseq
    %v955 = vshrl.u32 %v954, 7
    %v956 = vsub.s32 4, %v955
    %v957 = vrot.slane %v71, %v956
    %v958 = vlaneseq
    %v959 = vshrl.u32 %v958, 7
    %v960 = vsub.s32 4, %v959
    %v961 = vrot.slane %v72, %v960
    %v962 = vmul.f32 %v947, %v953
    %v963 = vmul.f32 %v948, %v957
    %v964 = vmul.f32 %v949, %v961
    %v965 = vlaneseq
    %v966 = vshrl.u32 %v965, 7
    %v967 = vsub.s32 5, %v966
    %v968 = vrot.slane %v70, %v967
    %v969 = vlaneseq
    %v970 = vshrl.u32 %v969, 7
    %v971 = vsub.s32 5, %v970
    %v972 = vrot.slane %v71, %v971
    %v973 = vlaneseq
    %v974 = vshrl.u32 %v973, 7
    %v975 = vsub.s32 5, %v974
    %v976 = vrot.slane %v72, %v975
    %v977 = vadd.f32 %v962, %v968
    %v978 = vadd.f32 %v963, %v972
    %v979 = vadd.f32 %v964, %v976
    %v980 = vmax.f32 %v977, 0.0
    %v981 = vmax.f32 %v978, 0.0
    %v982 = vmax.f32 %v979, 0.0
    %v983 = vpack.c.bf16 %v980, %v980
    %v984 = vpack.c.bf16 %v981, %v981
    %v985 = vpack.c.bf16 %v982, %v982
    %v986 = vpack.c.bf16 %v70, %v70
    %v987 = vpack.c.bf16 %v71, %v71
    %v988 = vpack.c.bf16 %v72, %v72
    %990 = vset.pattern.permute.xlu0 0
    %991 = vperm.xlu0 %990, %v70
    %v992 = vpop.permute.xlu0 %991
    %v996 = vrot.slane %v986, 3
    %v997 = vrot.slane %v987, 3
    %v998 = vrot.slane %v988, 3
    %v1002 = vrot.slane %v992, 7
    %1004 = vmatprep.subr.bf16.mxu0 %v984
    %1005 = vmatpush1.bf16.xpose.msra.mxu0 %v983
    %1006 = vmatprep.subr.bf16.mxu0 0
    %1007 = vmatpush1.bf16.xpose.msra.mxu0 0
    %1008 = vmatprep.subr.bf16.mxu0 0
    %1009 = vmatpush1.bf16.xpose.msra.mxu0 0
    %1010 = vmatprep.subr.bf16.mxu0 0
    %1011 = vmatpush1.bf16.xpose.msra.mxu0 0
    %1012 = vmatprep.subr.bf16.mxu0 0
    %1013 = vmatpush1.bf16.xpose.msra.mxu0 0
    %1014 = vmatprep.subr.bf16.mxu0 0
    %1015 = vmatpush1.bf16.xpose.msra.mxu0 0
    %1016 = vmatprep.subr.bf16.mxu0 0
    %1017 = vmatpush1.bf16.xpose.msra.mxu0 0
    %1018 = vmatprep.subr.bf16.mxu0 0
    %1019 = vmatpush1.bf16.xpose.msra.mxu0 0
    %1020 = vmatprep.subr.bf16.mxu0 0
    %1021 = vmatpush1.bf16.xpose.msra.mxu0 0
    %1022 = vmatprep.subr.bf16.mxu0 0
    %1023 = vmatpush1.bf16.xpose.msra.mxu0 0
    %1024 = vmatprep.subr.bf16.mxu0 0
    %1025 = vmatpush1.bf16.xpose.msra.mxu0 0
    %1026 = vmatprep.subr.bf16.mxu0 0
    %1027 = vmatpush1.bf16.xpose.msra.mxu0 0
    %1028 = vmatprep.subr.bf16.mxu0 0
    %1029 = vmatpush1.bf16.xpose.msra.mxu0 0
    %1030 = vmatprep.subr.bf16.mxu0 0
    %1031 = vmatpush1.bf16.xpose.msra.mxu0 0
    %1032 = vmatprep.subr.bf16.mxu0 0
    %1033 = vmatpush1.bf16.xpose.msra.mxu0 0
    %1034 = vmatprep.subr.bf16.mxu0 0
    %1035 = vmatpush1.bf16.xpose.msra.mxu0 0
    %1036 = vmatprep.mubr.bf16.mxu0 %v997
    %1037 = vmatmul.mubr.bf16.gmra.mrb[0].mxu0 %v996
    %v1038 = vpop.f32.mrb[0].mxu0
    %v1039 = vadd.f32 %v1002, %v1038
    %v1040 = vpop.f32.mrb[0].mxu0
    %v1041 = vpop.f32.mrb[0].mxu0
    %v1042 = vpop.f32.mrb[0].mxu0
    %1043 = vdwg.mxu0
    %1044 = vmatprep.subr.bf16.mxu0 0
    %1045 = vmatpush1.bf16.xpose.msra.mxu0 %v985
    %1046 = vmatprep.subr.bf16.mxu0 0
    %1047 = vmatpush1.bf16.xpose.msra.mxu0 0
    %1048 = vmatprep.subr.bf16.mxu0 0
    %1049 = vmatpush1.bf16.xpose.msra.mxu0 0
    %1050 = vmatprep.subr.bf16.mxu0 0
    %1051 = vmatpush1.bf16.xpose.msra.mxu0 0
    %1052 = vmatprep.subr.bf16.mxu0 0
    %1053 = vmatpush1.bf16.xpose.msra.mxu0 0
    %1054 = vmatprep.subr.bf16.mxu0 0
    %1055 = vmatpush1.bf16.xpose.msra.mxu0 0
    %1056 = vmatprep.subr.bf16.mxu0 0
    %1057 = vmatpush1.bf16.xpose.msra.mxu0 0
    %1058 = vmatprep.subr.bf16.mxu0 0
    %1059 = vmatpush1.bf16.xpose.msra.mxu0 0
    %1060 = vmatprep.subr.bf16.mxu0 0
    %1061 = vmatpush1.bf16.xpose.msra.mxu0 0
    %1062 = vmatprep.subr.bf16.mxu0 0
    %1063 = vmatpush1.bf16.xpose.msra.mxu0 0
    %1064 = vmatprep.subr.bf16.mxu0 0
    %1065 = vmatpush1.bf16.xpose.msra.mxu0 0
    %1066 = vmatprep.subr.bf16.mxu0 0
    %1067 = vmatpush1.bf16.xpose.msra.mxu0 0
    %1068 = vmatprep.subr.bf16.mxu0 0
    %1069 = vmatpush1.bf16.xpose.msra.mxu0 0
    %1070 = vmatprep.subr.bf16.mxu0 0
    %1071 = vmatpush1.bf16.xpose.msra.mxu0 0
    %1072 = vmatprep.subr.bf16.mxu0 0
    %1073 = vmatpush1.bf16.xpose.msra.mxu0 0
    %1074 = vmatprep.subr.bf16.mxu0 0
    %1075 = vmatpush1.bf16.xpose.msra.mxu0 0
    %1076 = vmatprep.mubr.bf16.mxu0 0
    %1077 = vmatmul.mubr.bf16.gmra.mrb[0].mxu0 %v998
    %v1078 = vpop.f32.mrb[0].mxu0
    %v1079 = vadd.f32 %v1039, %v1078
    %v1080 = vpop.f32.mrb[0].mxu0
    %v1081 = vpop.f32.mrb[0].mxu0
    %v1082 = vpop.f32.mrb[0].mxu0
    %1083 = vdwg.mxu0
    %vm1084 = vcmask 57344
    %1085 = vst.msk [vmem:[#allocation10] sm:$0x1] %vm1084, %v1079
    // Predicated region
    $region34: #{tpu_custom_call.1} parent=1 // pred_check
      _
    $region35: #{tpu_custom_call.1} parent=1 // pred_check_branch
      %1087 = sbr.rel (0) target = $region37
    $region36: #{tpu_custom_call.1} parent=1 // pred_region
      %s1089 = ssub.s32 16, 16
      %1090 = vsyncadd [#allocation4], %s1089
      %s1092 = sshll.u32 [#allocation10], 4
      %s1093 = int_to_ptr.vmem [resolvable:$true] %s1092
      %1095 = dma.vmem_to_hbm [thread:$0]  %s1093, 16, %s4, [#allocation4]
    $region37: #{tpu_custom_call.1} parent=1 // pred_fallthru
      _
    // Predicated region
    $region38: #{tpu_custom_call.1} parent=1 // pred_check
      _
    $region39: #{tpu_custom_call.1} parent=1 // pred_check_branch
      %1097 = sbr.rel (0) target = $region41
    $region40: #{tpu_custom_call.1} parent=1 // pred_region
      %1098 = dma.done [#allocation4], 16
    $region41: #{tpu_custom_call.1} parent=1 // pred_fallthru
      _
    %1099 = vsyncpa [#allocation3], 1
    %1100 = vsyncpa [#allocation6], 1
    %1101 = vsyncpa [#allocation9], 1
    %1102 = vsyncpa [#allocation4], 1

</llo_original>
